<compile_context>
chip_gen: v5e
topology: v5e:2x2
jax: 0.10.0
libtpu: 0.0.40
codegen_flags: <defaults>
</compile_context>

<pallas_src>
import functools

import jax
import jax.numpy as jnp
from jax.experimental import pallas as pl
from jax.experimental.pallas import tpu as pltpu

_LANES = 128


def _sublane_multiple(dtype):
    # Native packed sublane tiling: f32 -> 8, bf16/fp16 -> 16, int8/fp8 -> 32.
    return 8 * max(1, 4 // jnp.dtype(dtype).itemsize)


def _default_num_parts():
    # v7x has two TensorCores per chip; each streams its own half of the rows
    # via the leading "parallel" grid axis.  v5e/v6e have a single TC, where an
    # extra part only duplicates the finalize -- default to 1 there.
    try:
        kind = jax.devices()[0].device_kind.lower()
    except Exception:
        return 1
    return 2 if ("v7" in kind or "tpu7" in kind or "7x" in kind) else 1


def _sq_diff_sum_kernel(o1_ref, t1_ref, o2_ref, t2_ref, out_ref, acc_ref,
                        *, tm, rows, steps, needs_mask):
    # Hoist ALL grid queries to the top level of the kernel body (never inside
    # pl.when bodies) -- required for both compiled and interpret lowering.
    p = pl.program_id(0)            # parallel part (one per TensorCore on v7x)
    s = pl.program_id(1)            # streaming / reduction axis
    last = pl.num_programs(1) - 1

    @pl.when(s == 0)
    def _():
        acc_ref[...] = jnp.zeros_like(acc_ref)

    # Hot path: cast to f32 BEFORE subtraction (matches reference numerics for
    # bf16/fp16 inputs), accumulate squared diffs.
    d1 = o1_ref[...].astype(jnp.float32) - t1_ref[...].astype(jnp.float32)
    d2 = o2_ref[...].astype(jnp.float32) - t2_ref[...].astype(jnp.float32)
    sq = d1 * d1 + d2 * d2                                     # (tm, 128) f32

    if needs_mask:
        # Static `rows` bound; jnp.where (a select) also drops any garbage
        # (even NaN) read from the out-of-bounds part of a boundary block or
        # from a clamped duplicate tile.
        t = p * steps + s
        row_ids = jax.lax.broadcasted_iota(jnp.int32, (tm, _LANES), 0) + t * tm
        sq = jnp.where(row_ids < rows, sq, 0.0)

    # (tm,128)->(tm//8,8,128) is layout-preserving, so this is a short chain of
    # vreg adds on the VPU -- free filler under the DMA time.
    acc_ref[...] += sq.reshape(tm // 8, 8, _LANES).sum(axis=0)

    # Finalize once per part: write the per-lane partials; the final cross-lane
    # reduce over num_parts*8*128 f32 values happens (cheaply) outside.
    @pl.when(s == last)
    def _():
        out_ref[...] = acc_ref[...].reshape(1, 8, _LANES)


def recon_latent_loss(output1, output2, latent1, latent2, target1, target2,
                      epsilon=0.5, block_bytes=1 << 20, num_parts=None):
    assert output1.shape == target1.shape
    assert output2.shape == target2.shape
    assert latent1.shape == latent2.shape
    # TODO(synk): differently-sized output pairs would need separate denominators;
    # the module's intended use has equal-sized reconstructions.
    assert output1.size == output2.size

    f32 = jnp.float32
    n_out = output1.size
    inv_n_out = 1.0 / float(n_out)

    # ---- latent term: tiny tensors, plain jnp (review recommendation) --------
    dl = latent1.astype(f32) - latent2.astype(f32)
    latent_term = float(epsilon) * jnp.mean(dl * dl)

    streamed = (output1, target1, output2, target2)
    out_sub = max(_sublane_multiple(a.dtype) for a in streamed)
    max_item = max(jnp.dtype(a.dtype).itemsize for a in streamed)

    rows = n_out // _LANES
    tail = n_out - rows * _LANES

    def sq_sum_jnp(a, b):
        d = a.reshape(-1).astype(f32) - b.reshape(-1).astype(f32)
        return jnp.sum(d * d)

    if rows < out_sub:
        # Inputs smaller than one native sublane tile: plain jnp is optimal.
        sq_sum = sq_sum_jnp(output1, target1) + sq_sum_jnp(output2, target2)
        return sq_sum * inv_n_out + latent_term

    # Zero-copy bitcast reshapes of the big tensors (no jnp.pad copies).
    flats = [a.reshape(-1) for a in streamed]
    extra_sq = jnp.zeros((), f32)
    if tail:
        # Sub-128 tail: exact tiny jnp sum (MSE decomposes into sum / N).
        # TODO(synk): an in-kernel element mask on 1-D blocks would also make the
        # prefix slice below zero-copy; it is the only remaining copy, and only
        # for element counts that are not a multiple of 128.
        extra_sq = (sq_sum_jnp(flats[0][rows * _LANES:], flats[1][rows * _LANES:])
                    + sq_sum_jnp(flats[2][rows * _LANES:], flats[3][rows * _LANES:]))
        flats = [flt[:rows * _LANES] for flt in flats]
    slabs = [flt.reshape(rows, _LANES) for flt in flats]

    if num_parts is None:
        num_parts = _default_num_parts()

    # Row tile: ~block_bytes per streamed input block (~4*block_bytes of DMA per
    # grid step), rounded to the packed-sublane multiple and clamped to the
    # available rows.  f32 -> 2048 rows (1 MiB/block), bf16 -> 4096 rows.
    tm = max(out_sub, (block_bytes // (_LANES * max_item)) // out_sub * out_sub)
    tm = min(tm, (rows // out_sub) * out_sub)

    n_tiles = -(-rows // tm)
    num_parts = max(1, min(int(num_parts), n_tiles))
    steps = -(-n_tiles // num_parts)
    needs_mask = (num_parts * steps * tm != rows)

    # VMEM: 4 streamed inputs x 2 pipeline buffers x (tm,128) block (+ tiny out).
    vmem_bytes = sum(2 * tm * _LANES * jnp.dtype(a.dtype).itemsize for a in streamed)
    vmem_limit = None
    if vmem_bytes > 12 * 1024 * 1024:
        # Leave headroom; cap below v7x's 64 MiB of physical VMEM per TC.
        vmem_limit = min(int(vmem_bytes * 3 // 2) + (2 << 20), 48 * 1024 * 1024)

    # Clamp the fetch index: logical tiles past the end (only possible when
    # needs_mask) re-read the last valid tile and are masked to zero in-kernel.
    in_block = pl.BlockSpec(
        (tm, _LANES), lambda p, s: (jnp.minimum(p * steps + s, n_tiles - 1), 0))
    out_block = pl.BlockSpec((1, 8, _LANES), lambda p, s: (p, 0, 0))

    kernel = functools.partial(_sq_diff_sum_kernel, tm=tm, rows=rows,
                               steps=steps, needs_mask=needs_mask)

    partials = pl.pallas_call(
        kernel,
        out_shape=jax.ShapeDtypeStruct((num_parts, 8, _LANES), f32),
        grid=(num_parts, steps),
        in_specs=[in_block, in_block, in_block, in_block],
        out_specs=out_block,
        scratch_shapes=[pltpu.VMEM((8, _LANES), f32)],
        compiler_params=pltpu.CompilerParams(
            # TODO(synk): on v7x verify the leading axis is actually sharded
            # across both TensorCores; if not, switch it to pltpu.CORE_PARALLEL.
            dimension_semantics=("parallel", "arbitrary"),
            vmem_limit_bytes=vmem_limit,
        ),
    )(*slabs)

    sq_sum = jnp.sum(partials) + extra_sq
    return sq_sum * inv_n_out + latent_term


def recon_latent_loss_ref(output1, output2, latent1, latent2, target1, target2,
                          epsilon=0.5):
    mse = lambda a, b: jnp.mean((a.astype(jnp.float32) - b.astype(jnp.float32)) ** 2)
    return (mse(output1, target1) + mse(output2, target2)
            + epsilon * mse(latent1, latent2))


if __name__ == "__main__":
    key = jax.random.PRNGKey(0)

    def run_case(shape_out, shape_lat, dtype, tol):
        k1, k2, k3, k4, k5, k6 = jax.random.split(
            jax.random.fold_in(key, hash(shape_out) % 997), 6)
        output1 = jax.random.normal(k1, shape_out, jnp.float32).astype(dtype)
        output2 = jax.random.normal(k2, shape_out, jnp.float32).astype(dtype)
        target1 = jax.random.normal(k3, shape_out, jnp.float32).astype(dtype)
        target2 = jax.random.normal(k4, shape_out, jnp.float32).astype(dtype)
        latent1 = jax.random.normal(k5, shape_lat, jnp.float32).astype(dtype)
        latent2 = jax.random.normal(k6, shape_lat, jnp.float32).astype(dtype)

        loss = recon_latent_loss(output1, output2, latent1, latent2,
                                 target1, target2, epsilon=0.5)
        loss = jax.block_until_ready(loss)
        ref = recon_latent_loss_ref(output1, output2, latent1, latent2,
                                    target1, target2, epsilon=0.5)
        assert jnp.allclose(loss, ref, rtol=tol, atol=tol), (shape_out, dtype, loss, ref)

    # Small shapes consistent with the module: NCHW reconstructions + latent vectors.
    run_case((2, 4, 16, 16), (2, 32), jnp.float32, 1e-5)
    # Odd sizes -> exercises the in-kernel row mask and the sub-128 jnp tail path.
    run_case((2, 3, 15, 17), (2, 10), jnp.float32, 1e-5)
    # bf16 inputs -> exercises the cast-to-f32-before-subtract path and 16-row sublanes.
    run_case((2, 4, 16, 16), (2, 32), jnp.bfloat16, 1e-3)

    print("KERNEL_OK")
</pallas_src>

<mosaic_0001>
module attributes {stable_mosaic.version = 11 : i64} {
  func.func @_sq_diff_sum_kernel(%arg0: i32, %arg1: i32, %arg2: memref<16x128xf32, #tpu.memory_space<vmem>>, %arg3: memref<16x128xf32, #tpu.memory_space<vmem>>, %arg4: memref<16x128xf32, #tpu.memory_space<vmem>>, %arg5: memref<16x128xf32, #tpu.memory_space<vmem>>, %arg6: memref<1x8x128xf32, #tpu.memory_space<vmem>>, %arg7: memref<8x128xf32, #tpu.memory_space<vmem>>) attributes {dimension_semantics = [#tpu.dimension_semantics<parallel>, #tpu.dimension_semantics<arbitrary>], iteration_bounds = array<i64: 1, 1>, scalar_prefetch = 0 : i64, scratch_operands = 1 : i64, tpu.core_type = #tpu.core_type<tc>, window_params = [{transform_indices = @transform_0, window_bounds = array<i64: 16, 128>}, {transform_indices = @transform_1, window_bounds = array<i64: 16, 128>}, {transform_indices = @transform_2, window_bounds = array<i64: 16, 128>}, {transform_indices = @transform_3, window_bounds = array<i64: 16, 128>}, {transform_indices = @transform_4, window_bounds = array<i64: 1, 8, 128>}]} {
    %c0_i32 = arith.constant 0 : i32
    %0 = arith.cmpi eq, %arg1, %c0_i32 : i32
    %1 = arith.extui %0 : i1 to i32
    %c0_i32_0 = arith.constant 0 : i32
    %2 = arith.cmpi ne, %1, %c0_i32_0 : i32
    scf.if %2 {
      %cst_14 = arith.constant 0.000000e+00 : f32
      %20 = vector.broadcast %cst_14 : f32 to vector<8x128xf32>
      %c0_15 = arith.constant 0 : index
      %c0_16 = arith.constant 0 : index
      %21 = vector.load %arg7[%c0_15, %c0_16] : memref<8x128xf32, #tpu.memory_space<vmem>>, vector<8x128xf32>
      tpu.vector_store %arg7[%c0_15, %c0_16], %20 {strides = array<i32>} : memref<8x128xf32, #tpu.memory_space<vmem>>, vector<8x128xf32>,
    } else {
    }
    %c0 = arith.constant 0 : index
    %c0_1 = arith.constant 0 : index
    %3 = vector.load %arg2[%c0, %c0_1] : memref<16x128xf32, #tpu.memory_space<vmem>>, vector<16x128xf32>
    %c0_2 = arith.constant 0 : index
    %c0_3 = arith.constant 0 : index
    %4 = vector.load %arg3[%c0_2, %c0_3] : memref<16x128xf32, #tpu.memory_space<vmem>>, vector<16x128xf32>
    %5 = arith.subf %3, %4 : vector<16x128xf32>
    %c0_4 = arith.constant 0 : index
    %c0_5 = arith.constant 0 : index
    %6 = vector.load %arg4[%c0_4, %c0_5] : memref<16x128xf32, #tpu.memory_space<vmem>>, vector<16x128xf32>
    %c0_6 = arith.constant 0 : index
    %c0_7 = arith.constant 0 : index
    %7 = vector.load %arg5[%c0_6, %c0_7] : memref<16x128xf32, #tpu.memory_space<vmem>>, vector<16x128xf32>
    %8 = arith.subf %6, %7 : vector<16x128xf32>
    %9 = arith.mulf %5, %5 : vector<16x128xf32>
    %10 = arith.mulf %8, %8 : vector<16x128xf32>
    %11 = arith.addf %9, %10 : vector<16x128xf32>
    %c0_8 = arith.constant 0 : index
    %c0_9 = arith.constant 0 : index
    %12 = vector.load %arg7[%c0_8, %c0_9] : memref<8x128xf32, #tpu.memory_space<vmem>>, vector<8x128xf32>
    %13 = vector.shape_cast %11 : vector<16x128xf32> to vector<2x8x128xf32>
    %cst = arith.constant dense<0.000000e+00> : vector<8x128xf32>
    %14 = vector.multi_reduction <add>, %13, %cst [0] : vector<2x8x128xf32> to vector<8x128xf32>
    %15 = arith.addf %12, %14 : vector<8x128xf32>
    %c0_10 = arith.constant 0 : index
    %c0_11 = arith.constant 0 : index
    %16 = vector.load %arg7[%c0_10, %c0_11] : memref<8x128xf32, #tpu.memory_space<vmem>>, vector<8x128xf32>
    tpu.vector_store %arg7[%c0_10, %c0_11], %15 {strides = array<i32>} : memref<8x128xf32, #tpu.memory_space<vmem>>, vector<8x128xf32>,
    %c0_i32_12 = arith.constant 0 : i32
    %17 = arith.cmpi eq, %arg1, %c0_i32_12 : i32
    %18 = arith.extui %17 : i1 to i32
    %c0_i32_13 = arith.constant 0 : i32
    %19 = arith.cmpi ne, %18, %c0_i32_13 : i32
    scf.if %19 {
      %c0_14 = arith.constant 0 : index
      %c0_15 = arith.constant 0 : index
      %20 = vector.load %arg7[%c0_14, %c0_15] : memref<8x128xf32, #tpu.memory_space<vmem>>, vector<8x128xf32>
      %21 = vector.shape_cast %20 : vector<8x128xf32> to vector<1x8x128xf32>
      %c0_16 = arith.constant 0 : index
      %c0_17 = arith.constant 0 : index
      %c0_18 = arith.constant 0 : index
      %22 = vector.load %arg6[%c0_16, %c0_17, %c0_18] : memref<1x8x128xf32, #tpu.memory_space<vmem>>, vector<1x8x128xf32>
      tpu.vector_store %arg6[%c0_16, %c0_17, %c0_18], %21 {strides = array<i32>} : memref<1x8x128xf32, #tpu.memory_space<vmem>>, vector<1x8x128xf32>,
    } else {
    }
    return
  }
  func.func @transform_0(%arg0: i32, %arg1: i32) -> (i32, i32) {
    %c1_i32 = arith.constant 1 : i32
    %0 = arith.muli %arg0, %c1_i32 : i32
    %1 = arith.addi %0, %arg1 : i32
    %c0_i32 = arith.constant 0 : i32
    %2 = arith.minsi %1, %c0_i32 : i32
    %c0_i32_0 = arith.constant 0 : i32
    %c0_i32_1 = arith.constant 0 : i32
    return %2, %c0_i32_0 : i32, i32
  }
  func.func @transform_1(%arg0: i32, %arg1: i32) -> (i32, i32) {
    %c1_i32 = arith.constant 1 : i32
    %0 = arith.muli %arg0, %c1_i32 : i32
    %1 = arith.addi %0, %arg1 : i32
    %c0_i32 = arith.constant 0 : i32
    %2 = arith.minsi %1, %c0_i32 : i32
    %c0_i32_0 = arith.constant 0 : i32
    %c0_i32_1 = arith.constant 0 : i32
    return %2, %c0_i32_0 : i32, i32
  }
  func.func @transform_2(%arg0: i32, %arg1: i32) -> (i32, i32) {
    %c1_i32 = arith.constant 1 : i32
    %0 = arith.muli %arg0, %c1_i32 : i32
    %1 = arith.addi %0, %arg1 : i32
    %c0_i32 = arith.constant 0 : i32
    %2 = arith.minsi %1, %c0_i32 : i32
    %c0_i32_0 = arith.constant 0 : i32
    %c0_i32_1 = arith.constant 0 : i32
    return %2, %c0_i32_0 : i32, i32
  }
  func.func @transform_3(%arg0: i32, %arg1: i32) -> (i32, i32) {
    %c1_i32 = arith.constant 1 : i32
    %0 = arith.muli %arg0, %c1_i32 : i32
    %1 = arith.addi %0, %arg1 : i32
    %c0_i32 = arith.constant 0 : i32
    %2 = arith.minsi %1, %c0_i32 : i32
    %c0_i32_0 = arith.constant 0 : i32
    %c0_i32_1 = arith.constant 0 : i32
    return %2, %c0_i32_0 : i32, i32
  }
  func.func @transform_4(%arg0: i32, %arg1: i32) -> (i32, i32, i32) {
    %c0_i32 = arith.constant 0 : i32
    %c0_i32_0 = arith.constant 0 : i32
    %c0_i32_1 = arith.constant 0 : i32
    return %arg0, %c0_i32, %c0_i32_0 : i32, i32, i32
  }
}

</mosaic_0001>

<llo_original>
// kernel: tpu_custom_call.1
$region0: #{tpu_custom_call.1}
  #allocation0 [shape = 'u32[]', space=smem, size = 0x4, offset = 0x4, fixed_abs, tag = 'smem constant byte address 0x4 - core index']
  #allocation1 [shape = 'u32[72,128]{1,0:T(1,128)}', space=vmem, size = 0x9000, scoped, tag = 'internal scratch']
  #allocation2 [shape = 'f32[8,128]{1,0:T(8,128)}', space=vmem, size = 0x1000, scoped, tag = 'scratch operand']
  %s0 = inlined_call_operand.hbm [shape: f32[16,128], index: 0, kind: input, shape index: {}]
  %s1 = inlined_call_operand.hbm [shape: f32[16,128], index: 1, kind: input, shape index: {}]
  %s2 = inlined_call_operand.hbm [shape: f32[16,128], index: 2, kind: input, shape index: {}]
  %s3 = inlined_call_operand.hbm [shape: f32[16,128], index: 3, kind: input, shape index: {}]
  %s4 = inlined_call_operand.hbm [shape: f32[1,8,128], index: 4, kind: output, shape index: {}]
  %s5 = sld [smem:[#allocation0]]
  $region50: #{tpu_custom_call.1} parent=0
    _
  %s7 = ssub.s32 1, %s5
  %s8 = scalar_select 0, %s7, %s5
  $region1: #{tpu_custom_call.1} parent=0
    #allocation3 [shape = 'u8[8192]{0}', space=vmem, size = 0x2000, scoped, tag = 'input window, operand 0, single buffered']
    #allocation4 [shape = 's32[1]{0}', space=sflag, size = 0x4, scoped, tag = 'scoped memory for tpu_custom_call.1']
    #allocation5 [shape = 's32[1]{0}', space=sflag, size = 0x4, scoped, tag = 'scoped memory for tpu_custom_call.1']
    #allocation6 [shape = 'u8[8192]{0}', space=vmem, size = 0x2000, scoped, tag = 'input window, operand 1, single buffered']
    #allocation7 [shape = 's32[1]{0}', space=sflag, size = 0x4, scoped, tag = 'scoped memory for tpu_custom_call.1']
    #allocation8 [shape = 'u8[8192]{0}', space=vmem, size = 0x2000, scoped, tag = 'input window, operand 2, single buffered']
    #allocation9 [shape = 'u8[8192]{0}', space=vmem, size = 0x2000, scoped, tag = 'input window, operand 3, single buffered']
    #allocation10 [shape = 's32[1]{0}', space=sflag, size = 0x4, scoped, tag = 'scoped memory for tpu_custom_call.1']
    #allocation11 [shape = 'u8[4096]{0}', space=vmem, size = 0x1000, scoped, tag = 'output window, operand 0, single buffered']
    %9 = vsyncpa [#allocation4], 0
    %10 = vsyncpa [#allocation7], 0
    %11 = vsyncpa [#allocation10], 0
    %12 = vsyncpa [#allocation5], 0
    // Predicated region
    $region2: #{tpu_custom_call.1} parent=1 // pred_check
      _
    $region3: #{tpu_custom_call.1} parent=1 // pred_check_branch
      %14 = sbr.rel (0) target = $region5
    $region4: #{tpu_custom_call.1} parent=1 // pred_region
      %s15 = sadd.s32 0, 0
      %p16 = scmp.lt.s32.totalorder %s15, 0
      %s17 = scalar_select %p16, %s15, 0
      %s18 = smul.u32 2, %s17
      %20 = vsyncadd [#allocation4], 0
      %s21 = smul.addr %s18, 8
      %s22 = scalar_lea.hbm %s0, %s21
      %s23 = sshll.u32 %s22, 4
      %s24 = int_to_ptr.hbm [resolvable:$true] %s23
      %s25 = sshll.u32 [#allocation3], 4
      %s26 = int_to_ptr.vmem [resolvable:$true] %s25
      %31 = dma.hbm_to_vmem [thread:$0]  %s24, 256, %s26, [#allocation4], 128, 128, 8
    $region5: #{tpu_custom_call.1} parent=1 // pred_fallthru
      _
    // Predicated region
    $region6: #{tpu_custom_call.1} parent=1 // pred_check
      _
    $region7: #{tpu_custom_call.1} parent=1 // pred_check_branch
      %33 = sbr.rel (0) target = $region9
    $region8: #{tpu_custom_call.1} parent=1 // pred_region
      %s34 = sadd.s32 0, 0
      %p35 = scmp.lt.s32.totalorder %s34, 0
      %s36 = scalar_select %p35, %s34, 0
      %s37 = smul.u32 2, %s36
      %39 = vsyncadd [#allocation7], 0
      %s40 = smul.addr %s37, 8
      %s41 = scalar_lea.hbm %s1, %s40
      %s42 = sshll.u32 %s41, 4
      %s43 = int_to_ptr.hbm [resolvable:$true] %s42
      %s44 = sshll.u32 [#allocation6], 4
      %s45 = int_to_ptr.vmem [resolvable:$true] %s44
      %50 = dma.hbm_to_vmem [thread:$0]  %s43, 256, %s45, [#allocation7], 128, 128, 8
    $region9: #{tpu_custom_call.1} parent=1 // pred_fallthru
      _
    // Predicated region
    $region10: #{tpu_custom_call.1} parent=1 // pred_check
      _
    $region11: #{tpu_custom_call.1} parent=1 // pred_check_branch
      %52 = sbr.rel (0) target = $region13
    $region12: #{tpu_custom_call.1} parent=1 // pred_region
      %s53 = sadd.s32 0, 0
      %p54 = scmp.lt.s32.totalorder %s53, 0
      %s55 = scalar_select %p54, %s53, 0
      %s56 = smul.u32 2, %s55
      %58 = vsyncadd [#allocation7], 0
      %s59 = smul.addr %s56, 8
      %s60 = scalar_lea.hbm %s2, %s59
      %s61 = sshll.u32 %s60, 4
      %s62 = int_to_ptr.hbm [resolvable:$true] %s61
      %s63 = sshll.u32 [#allocation8], 4
      %s64 = int_to_ptr.vmem [resolvable:$true] %s63
      %69 = dma.hbm_to_vmem [thread:$0]  %s62, 256, %s64, [#allocation7], 128, 128, 8
    $region13: #{tpu_custom_call.1} parent=1 // pred_fallthru
      _
    // Predicated region
    $region14: #{tpu_custom_call.1} parent=1 // pred_check
      _
    $region15: #{tpu_custom_call.1} parent=1 // pred_check_branch
      %71 = sbr.rel (0) target = $region17
    $region16: #{tpu_custom_call.1} parent=1 // pred_region
      %s72 = sadd.s32 0, 0
      %p73 = scmp.lt.s32.totalorder %s72, 0
      %s74 = scalar_select %p73, %s72, 0
      %s75 = smul.u32 2, %s74
      %77 = vsyncadd [#allocation10], 0
      %s78 = smul.addr %s75, 8
      %s79 = scalar_lea.hbm %s3, %s78
      %s80 = sshll.u32 %s79, 4
      %s81 = int_to_ptr.hbm [resolvable:$true] %s80
      %s82 = sshll.u32 [#allocation9], 4
      %s83 = int_to_ptr.vmem [resolvable:$true] %s82
      %88 = dma.hbm_to_vmem [thread:$0]  %s81, 256, %s83, [#allocation10], 128, 128, 8
    $region17: #{tpu_custom_call.1} parent=1 // pred_fallthru
      _
    // Predicated region
    $region18: #{tpu_custom_call.1} parent=1 // pred_check
      _
    $region19: #{tpu_custom_call.1} parent=1 // pred_check_branch
      %90 = sbr.rel (0) target = $region21
    $region20: #{tpu_custom_call.1} parent=1 // pred_region
      %92 = dma.done [#allocation4], 256
    $region21: #{tpu_custom_call.1} parent=1 // pred_fallthru
      _
    // Predicated region
    $region22: #{tpu_custom_call.1} parent=1 // pred_check
      _
    $region23: #{tpu_custom_call.1} parent=1 // pred_check_branch
      %94 = sbr.rel (0) target = $region25
    $region24: #{tpu_custom_call.1} parent=1 // pred_region
      %96 = dma.done [#allocation7], 256
    $region25: #{tpu_custom_call.1} parent=1 // pred_fallthru
      _
    // Predicated region
    $region26: #{tpu_custom_call.1} parent=1 // pred_check
      _
    $region27: #{tpu_custom_call.1} parent=1 // pred_check_branch
      %98 = sbr.rel (0) target = $region29
    $region28: #{tpu_custom_call.1} parent=1 // pred_region
      %100 = dma.done [#allocation7], 256
    $region29: #{tpu_custom_call.1} parent=1 // pred_fallthru
      _
    // Predicated region
    $region30: #{tpu_custom_call.1} parent=1 // pred_check
      _
    $region31: #{tpu_custom_call.1} parent=1 // pred_check_branch
      %102 = sbr.rel (0) target = $region33
    $region32: #{tpu_custom_call.1} parent=1 // pred_region
      %104 = dma.done [#allocation10], 256
    $region33: #{tpu_custom_call.1} parent=1 // pred_fallthru
      _
    %s105 = sadd.s32 0, 0
    %p106 = scmp.lt.s32.totalorder %s105, 0
    %s107 = scalar_select %p106, %s105, 0
    %s108 = smul.u32 2, %s107
    %s109 = sadd.s32 0, 0
    %p110 = scmp.lt.s32.totalorder %s109, 0
    %s111 = scalar_select %p110, %s109, 0
    %s112 = smul.u32 2, %s111
    %s113 = sadd.s32 0, 0
    %p114 = scmp.lt.s32.totalorder %s113, 0
    %s115 = scalar_select %p114, %s113, 0
    %s116 = smul.u32 2, %s115
    %s117 = sadd.s32 0, 0
    %p118 = scmp.lt.s32.totalorder %s117, 0
    %s119 = scalar_select %p118, %s117, 0
    %s120 = smul.u32 2, %s119
    %p121 = scmp.eq.s32.totalorder 0, 0
    // Predicated region
    $region34: #{tpu_custom_call.1} parent=1 // pred_check
      %p122 = pneg %p121
    $region35: #{tpu_custom_call.1} parent=1 // pred_check_branch
      %124 = sbr.rel (%p122) target = $region37
    $region36: #{tpu_custom_call.1} parent=1 // pred_region
      %125 = vst [vmem:[#allocation2] sm:$0xff] 0.0
    $region37: #{tpu_custom_call.1} parent=1 // pred_fallthru
      _
    %v126 = vld [vmem:[#allocation3] sm:$0xff]
    %v127 = vld [vmem:[#allocation3 + $0x8] sm:$0xff]
    %v128 = vld [vmem:[#allocation6] sm:$0xff]
    %v129 = vld [vmem:[#allocation6 + $0x8] sm:$0xff]
    %v130 = vsub.f32 %v126, %v128
    %v131 = vsub.f32 %v127, %v129
    %v132 = vld [vmem:[#allocation8] sm:$0xff]
    %v133 = vld [vmem:[#allocation8 + $0x8] sm:$0xff]
    %v134 = vld [vmem:[#allocation9] sm:$0xff]
    %v135 = vld [vmem:[#allocation9 + $0x8] sm:$0xff]
    %v136 = vsub.f32 %v132, %v134
    %v137 = vsub.f32 %v133, %v135
    %v138 = vmul.f32 %v130, %v130
    %v139 = vmul.f32 %v131, %v131
    %v140 = vmul.f32 %v136, %v136
    %v141 = vmul.f32 %v137, %v137
    %v142 = vadd.f32 %v138, %v140
    %v143 = vadd.f32 %v139, %v141
    %v144 = vld [vmem:[#allocation2] sm:$0xff]
    %v145 = vadd.f32 %v142, %v143
    %v146 = vadd.f32 %v144, %v145
    %147 = vst [vmem:[#allocation2] sm:$0xff] %v146
    // Predicated region
    $region38: #{tpu_custom_call.1} parent=1 // pred_check
      %p148 = pneg %p121
    $region39: #{tpu_custom_call.1} parent=1 // pred_check_branch
      %150 = sbr.rel (%p148) target = $region41
    $region40: #{tpu_custom_call.1} parent=1 // pred_region
      %v151 = vld [vmem:[#allocation2] sm:$0xff]
      %152 = vst [vmem:[#allocation11] sm:$0xff] %v151
    $region41: #{tpu_custom_call.1} parent=1 // pred_fallthru
      _
    // Predicated region
    $region42: #{tpu_custom_call.1} parent=1 // pred_check
      _
    $region43: #{tpu_custom_call.1} parent=1 // pred_check_branch
      %154 = sbr.rel (0) target = $region45
    $region44: #{tpu_custom_call.1} parent=1 // pred_region
      %156 = vsyncadd [#allocation5], 0
      %s158 = sshll.u32 [#allocation11], 4
      %s159 = int_to_ptr.vmem [resolvable:$true] %s158
      %s160 = sshll.u32 %s4, 4
      %s161 = int_to_ptr.hbm [resolvable:$true] %s160
      %163 = dma.vmem_to_hbm [thread:$0]  %s159, 128, %s161, [#allocation5]
    $region45: #{tpu_custom_call.1} parent=1 // pred_fallthru
      _
    // Predicated region
    $region46: #{tpu_custom_call.1} parent=1 // pred_check
      _
    $region47: #{tpu_custom_call.1} parent=1 // pred_check_branch
      %165 = sbr.rel (0) target = $region49
    $region48: #{tpu_custom_call.1} parent=1 // pred_region
      %167 = dma.done [#allocation5], 128
    $region49: #{tpu_custom_call.1} parent=1 // pred_fallthru
      _
    %168 = vsyncpa [#allocation4], 1
    %169 = vsyncpa [#allocation7], 1
    %170 = vsyncpa [#allocation10], 1
    %171 = vsyncpa [#allocation5], 1

</llo_original>
